<compile_context>
chip_gen: v7x
topology: tpu7x:2x2x1
jax: 0.10.0
libtpu: 0.0.40
codegen_flags: <defaults>
</compile_context>

<pallas_src>
import functools

import jax
import jax.numpy as jnp
from jax.experimental import pallas as pl
from jax.experimental.pallas import tpu as pltpu

_LANE = 128


def _kto_kernel(policy_ref, reference_ref,          # (8, L) packed logps
                rewards_ref,                         # (8, L) beta * logratios
                scalars_ref,                         # SMEM (2,): [loss, KL]
                *, beta, n_c, n_r, n_k,
                desirable_weight, undesirable_weight, inv_world_size):
    p = policy_ref[...]
    r = reference_ref[...]
    logratio = p - r                                  # padded lanes / rows are 0 - 0 = 0

    shape = logratio.shape
    row = jax.lax.broadcasted_iota(jnp.int32, shape, 0)
    lane = jax.lax.broadcasted_iota(jnp.int32, shape, 1)

    # ---------------- KL term (row 2); pad lanes are exactly 0 so no lane mask ----------------
    inv_nk = (1.0 / n_k) if n_k > 0 else float("nan")
    kl_sum = jnp.sum(jnp.where(row == 2, logratio, 0.0))
    kl = jnp.maximum(kl_sum * (inv_nk * inv_world_size), 0.0)

    # ---------------- rewards (row 0 = chosen, row 1 = rejected) ----------------
    rewards_ref[...] = beta * logratio

    # ---------------- fused chosen / rejected losses ----------------
    # chosen:   1 - sigmoid( beta * (logratio - KL))
    # rejected: 1 - sigmoid( beta * (KL - logratio)) = 1 - sigmoid(-beta * (logratio - KL))
    signed_beta = jnp.where(row == 1, -beta, beta)
    arg = signed_beta * (logratio - kl)
    losses = 1.0 - 1.0 / (1.0 + jnp.exp(-arg))

    # compile-time weight/mask matrix: desirable on valid chosen lanes,
    # undesirable on valid rejected lanes, 0 elsewhere (kills pad lanes + KL rows).
    w = jnp.where((row == 0) & (lane < n_c), desirable_weight,
                  jnp.where((row == 1) & (lane < n_r), undesirable_weight, 0.0))

    inv_total = (1.0 / (n_c + n_r)) if (n_c + n_r) > 0 else float("nan")
    loss = jnp.sum(w * losses) * inv_total

    scalars_ref[0] = loss
    scalars_ref[1] = kl


@functools.partial(
    jax.jit,
    static_argnames=("beta", "desirable_weight", "undesirable_weight", "world_size"),
)
def kto_loss(policy_chosen_logps,
             policy_rejected_logps,
             policy_KL_logps,
             reference_chosen_logps,
             reference_rejected_logps,
             reference_KL_logps,
             *,
             beta: float,
             desirable_weight: float,
             undesirable_weight: float,
             world_size: int = 1):
    """Pallas implementation of KTOLoss.forward.

    Returns (losses, chosen_rewards, rejected_rewards, KL) like the torch module.
    """
    n_c = policy_chosen_logps.shape[0]
    n_r = policy_rejected_logps.shape[0]
    n_k = policy_KL_logps.shape[0]

    max_n = max(n_c, n_r, n_k, 1)
    L = ((max_n + _LANE - 1) // _LANE) * _LANE        # lane-dense, multiple of 128

    def pack(chosen, rejected, kl_logps):
        out = jnp.zeros((8, L), jnp.float32)
        out = out.at[0, :n_c].set(chosen.astype(jnp.float32))
        out = out.at[1, :n_r].set(rejected.astype(jnp.float32))
        out = out.at[2, :n_k].set(kl_logps.astype(jnp.float32))
        return out

    policy_packed = pack(policy_chosen_logps, policy_rejected_logps, policy_KL_logps)
    reference_packed = pack(reference_chosen_logps, reference_rejected_logps,
                            reference_KL_logps)

    kernel = functools.partial(
        _kto_kernel,
        beta=float(beta),
        n_c=int(n_c), n_r=int(n_r), n_k=int(n_k),
        desirable_weight=float(desirable_weight),
        undesirable_weight=float(undesirable_weight),
        inv_world_size=1.0 / float(world_size),
    )

    rewards, scalars = pl.pallas_call(
        kernel,
        out_shape=(
            jax.ShapeDtypeStruct((8, L), jnp.float32),   # rewards (rows 0/1)
            jax.ShapeDtypeStruct((2,), jnp.float32),     # [loss, KL]
        ),
        in_specs=[
            pl.BlockSpec(memory_space=pltpu.MemorySpace.VMEM),
            pl.BlockSpec(memory_space=pltpu.MemorySpace.VMEM),
        ],
        out_specs=(
            pl.BlockSpec(memory_space=pltpu.MemorySpace.VMEM),
            pl.BlockSpec(memory_space=pltpu.MemorySpace.SMEM),
        ),
    )(policy_packed, reference_packed)

    return (scalars[0],
            rewards[0, :n_c],
            rewards[1, :n_r],
            scalars[1])


def kto_loss_ref(policy_chosen_logps, policy_rejected_logps, policy_KL_logps,
                 reference_chosen_logps, reference_rejected_logps, reference_KL_logps,
                 *, beta, desirable_weight, undesirable_weight, world_size=1):
    """Pure-JAX reference (single device: all_reduce over 1 rank)."""
    kl = jnp.mean(policy_KL_logps - reference_KL_logps)
    kl = jnp.maximum(kl / world_size, 0.0)

    chosen_logratios = policy_chosen_logps - reference_chosen_logps
    chosen_losses = 1.0 - jax.nn.sigmoid(beta * (chosen_logratios - kl))
    chosen_rewards = beta * chosen_logratios

    rejected_logratios = policy_rejected_logps - reference_rejected_logps
    rejected_losses = 1.0 - jax.nn.sigmoid(beta * (kl - rejected_logratios))
    rejected_rewards = beta * rejected_logratios

    losses = jnp.concatenate(
        (desirable_weight * chosen_losses, undesirable_weight * rejected_losses), axis=0
    ).mean()
    return losses, chosen_rewards, rejected_rewards, kl


if __name__ == "__main__":
    key = jax.random.PRNGKey(0)
    ks = jax.random.split(key, 6)

    # Uneven sampling: 5 chosen, 3 rejected, 8 KL samples.
    n_chosen, n_rejected, n_kl = 5, 3, 8
    beta, dw, uw, world_size = 0.1, 1.0, 1.0, 1

    policy_chosen = jax.random.normal(ks[0], (n_chosen,), jnp.float32) * 2.0 - 10.0
    reference_chosen = jax.random.normal(ks[1], (n_chosen,), jnp.float32) * 2.0 - 10.0
    policy_rejected = jax.random.normal(ks[2], (n_rejected,), jnp.float32) * 2.0 - 12.0
    reference_rejected = jax.random.normal(ks[3], (n_rejected,), jnp.float32) * 2.0 - 12.0
    policy_kl = jax.random.normal(ks[4], (n_kl,), jnp.float32) * 2.0 - 11.0
    reference_kl = jax.random.normal(ks[5], (n_kl,), jnp.float32) * 2.0 - 11.0

    loss, c_rw, r_rw, kl = kto_loss(
        policy_chosen, policy_rejected, policy_kl,
        reference_chosen, reference_rejected, reference_kl,
        beta=beta, desirable_weight=dw, undesirable_weight=uw, world_size=world_size,
    )
    jax.block_until_ready(loss)

    loss_r, c_rw_r, r_rw_r, kl_r = kto_loss_ref(
        policy_chosen, policy_rejected, policy_kl,
        reference_chosen, reference_rejected, reference_kl,
        beta=beta, desirable_weight=dw, undesirable_weight=uw, world_size=world_size,
    )

    assert jnp.allclose(loss, loss_r, atol=1e-5, rtol=1e-5), (loss, loss_r)
    assert jnp.allclose(kl, kl_r, atol=1e-5, rtol=1e-5), (kl, kl_r)
    assert jnp.allclose(c_rw, c_rw_r, atol=1e-5, rtol=1e-5)
    assert jnp.allclose(r_rw, r_rw_r, atol=1e-5, rtol=1e-5)
    print("KERNEL_OK")
</pallas_src>

<mosaic_0001>
module attributes {stable_mosaic.version = 11 : i64} {
  func.func @_kto_kernel(%arg0: memref<8x128xf32, #tpu.memory_space<vmem>>, %arg1: memref<8x128xf32, #tpu.memory_space<vmem>>, %arg2: memref<8x128xf32, #tpu.memory_space<vmem>>, %arg3: memref<2xf32, #tpu.memory_space<smem>>) attributes {dimension_semantics = [], scalar_prefetch = 0 : i64, scratch_operands = 0 : i64, tpu.core_type = #tpu.core_type<tc>} {
    %c0 = arith.constant 0 : index
    %c0_0 = arith.constant 0 : index
    %0 = vector.load %arg0[%c0, %c0_0] : memref<8x128xf32, #tpu.memory_space<vmem>>, vector<8x128xf32>
    %c0_1 = arith.constant 0 : index
    %c0_2 = arith.constant 0 : index
    %1 = vector.load %arg1[%c0_1, %c0_2] : memref<8x128xf32, #tpu.memory_space<vmem>>, vector<8x128xf32>
    %2 = arith.subf %0, %1 : vector<8x128xf32>
    %3 = tpu.iota {dimensions = array<i32: 0>} : vector<8x128xi32>
    %4 = tpu.iota {dimensions = array<i32: 1>} : vector<8x128xi32>
    %c2_i32 = arith.constant 2 : i32
    %5 = vector.broadcast %c2_i32 : i32 to vector<8x128xi32>
    %6 = arith.cmpi eq, %3, %5 : vector<8x128xi32>
    %cst = arith.constant 0.000000e+00 : f32
    %7 = vector.broadcast %cst : f32 to vector<8x128xf32>
    %8 = arith.select %6, %2, %7 : vector<8x128xi1>, vector<8x128xf32>
    %9 = vector.shape_cast %8 : vector<8x128xf32> to vector<1x8x128xf32>
    %cst_3 = arith.constant dense<0.000000e+00> : vector<1xf32>
    %10 = vector.multi_reduction <add>, %9, %cst_3 [1, 2] : vector<1x8x128xf32> to vector<1xf32>
    %11 = vector.shape_cast %10 : vector<1xf32> to vector<1x1x1xf32>
    %12 = vector.extract %11[0, 0, 0] : f32 from vector<1x1x1xf32>
    %cst_4 = arith.constant 1.250000e-01 : f32
    %13 = arith.mulf %12, %cst_4 : f32
    %cst_5 = arith.constant 0.000000e+00 : f32
    %14 = arith.maximumf %13, %cst_5 : f32
    %cst_6 = arith.constant 1.000000e-01 : f32
    %15 = vector.broadcast %cst_6 : f32 to vector<8x128xf32>
    %16 = arith.mulf %15, %2 : vector<8x128xf32>
    %c0_7 = arith.constant 0 : index
    %c0_8 = arith.constant 0 : index
    %17 = vector.load %arg2[%c0_7, %c0_8] : memref<8x128xf32, #tpu.memory_space<vmem>>, vector<8x128xf32>
    tpu.vector_store %arg2[%c0_7, %c0_8], %16 {strides = array<i32>} : memref<8x128xf32, #tpu.memory_space<vmem>>, vector<8x128xf32>,
    %c1_i32 = arith.constant 1 : i32
    %18 = vector.broadcast %c1_i32 : i32 to vector<8x128xi32>
    %19 = arith.cmpi eq, %3, %18 : vector<8x128xi32>
    %cst_9 = arith.constant -1.000000e-01 : f32
    %cst_10 = arith.constant 1.000000e-01 : f32
    %20 = vector.broadcast %cst_9 : f32 to vector<8x128xf32>
    %21 = vector.broadcast %cst_10 : f32 to vector<8x128xf32>
    %22 = arith.select %19, %20, %21 : vector<8x128xi1>, vector<8x128xf32>
    %23 = vector.broadcast %14 : f32 to vector<8x128xf32>
    %24 = arith.subf %2, %23 : vector<8x128xf32>
    %25 = arith.mulf %22, %24 : vector<8x128xf32>
    %cst_11 = arith.constant 0.000000e+00 : f32
    %26 = vector.broadcast %cst_11 : f32 to vector<8x128xf32>
    %27 = arith.subf %26, %25 : vector<8x128xf32>
    %28 = math.exp %27 : vector<8x128xf32>
    %cst_12 = arith.constant 1.000000e+00 : f32
    %29 = vector.broadcast %cst_12 : f32 to vector<8x128xf32>
    %30 = arith.addf %29, %28 : vector<8x128xf32>
    %cst_13 = arith.constant 1.000000e+00 : f32
    %31 = vector.broadcast %cst_13 : f32 to vector<8x128xf32>
    %32 = arith.divf %31, %30 : vector<8x128xf32>
    %cst_14 = arith.constant 1.000000e+00 : f32
    %33 = vector.broadcast %cst_14 : f32 to vector<8x128xf32>
    %34 = arith.subf %33, %32 : vector<8x128xf32>
    %c0_i32 = arith.constant 0 : i32
    %35 = vector.broadcast %c0_i32 : i32 to vector<8x128xi32>
    %36 = arith.cmpi eq, %3, %35 : vector<8x128xi32>
    %c5_i32 = arith.constant 5 : i32
    %37 = vector.broadcast %c5_i32 : i32 to vector<8x128xi32>
    %38 = arith.cmpi slt, %4, %37 : vector<8x128xi32>
    %39 = arith.andi %36, %38 : vector<8x128xi1>
    %c1_i32_15 = arith.constant 1 : i32
    %40 = vector.broadcast %c1_i32_15 : i32 to vector<8x128xi32>
    %41 = arith.cmpi eq, %3, %40 : vector<8x128xi32>
    %c3_i32 = arith.constant 3 : i32
    %42 = vector.broadcast %c3_i32 : i32 to vector<8x128xi32>
    %43 = arith.cmpi slt, %4, %42 : vector<8x128xi32>
    %44 = arith.andi %41, %43 : vector<8x128xi1>
    %cst_16 = arith.constant 1.000000e+00 : f32
    %cst_17 = arith.constant 0.000000e+00 : f32
    %45 = vector.broadcast %cst_16 : f32 to vector<8x128xf32>
    %46 = vector.broadcast %cst_17 : f32 to vector<8x128xf32>
    %47 = arith.select %44, %45, %46 : vector<8x128xi1>, vector<8x128xf32>
    %cst_18 = arith.constant 1.000000e+00 : f32
    %48 = vector.broadcast %cst_18 : f32 to vector<8x128xf32>
    %49 = arith.select %39, %48, %47 : vector<8x128xi1>, vector<8x128xf32>
    %50 = arith.mulf %49, %34 : vector<8x128xf32>
    %51 = vector.shape_cast %50 : vector<8x128xf32> to vector<1x8x128xf32>
    %cst_19 = arith.constant dense<0.000000e+00> : vector<1xf32>
    %52 = vector.multi_reduction <add>, %51, %cst_19 [1, 2] : vector<1x8x128xf32> to vector<1xf32>
    %53 = vector.shape_cast %52 : vector<1xf32> to vector<1x1x1xf32>
    %54 = vector.extract %53[0, 0, 0] : f32 from vector<1x1x1xf32>
    %cst_20 = arith.constant 1.250000e-01 : f32
    %55 = arith.mulf %54, %cst_20 : f32
    %c0_21 = arith.constant 0 : index
    %56 = memref.load %arg3[%c0_21] : memref<2xf32, #tpu.memory_space<smem>>
    memref.store %55, %arg3[%c0_21] : memref<2xf32, #tpu.memory_space<smem>>
    %c1 = arith.constant 1 : index
    %57 = memref.load %arg3[%c1] : memref<2xf32, #tpu.memory_space<smem>>
    memref.store %14, %arg3[%c1] : memref<2xf32, #tpu.memory_space<smem>>
    return
  }
}

</mosaic_0001>

<llo_original>
// kernel: kto_loss.1
$region0: #{kto_loss.1}
  #allocation0 [shape = 'u32[]', space=smem, size = 0x4, offset = 0x4, fixed_abs, tag = 'smem constant byte address 0x4 - core index']
  #allocation1 [shape = 'u32[144,128]{1,0:T(1,128)}', space=vmem, size = 0x12000, scoped, tag = 'internal scratch']
  %s0 = inlined_call_operand.vmem [shape: f32[8,128], index: 0, kind: input, shape index: {}]
  %s1 = inlined_call_operand.vmem [shape: f32[8,128], index: 1, kind: input, shape index: {}]
  %s2 = inlined_call_operand.vmem [shape: f32[8,128], index: 2, kind: output, shape index: {0}]
  %s3 = inlined_call_operand.vmem [shape: f32[2], index: 3, kind: output, shape index: {1}]
  %4 = xla_tuple %s2, %s3
  %s5 = sld [smem:[#allocation0]]
  $region26: #{kto_loss.1} parent=0
    _
  %s7 = ssub.s32 1, %s5
  %s8 = scalar_select 0, %s7, %s5
  $region1: #{kto_loss.1} parent=0
    #allocation2 [shape = 'u8[512]{0}', space=smem, size = 0x200, scoped, tag = 'output window, operand 1, single buffered']
    #allocation3 [shape = 's32[1]{0}', space=sflag, size = 0x4, scoped, tag = 'scoped memory for kto_loss.1']
    %9 = vsyncpa [#allocation3], 0
    // Predicated region
    $region2: #{kto_loss.1} parent=1 // pred_check
      _
    $region3: #{kto_loss.1} parent=1 // pred_check_branch
      %11 = sbr.rel (0) target = $region5
    $region4: #{kto_loss.1} parent=1 // pred_region
      _
    $region5: #{kto_loss.1} parent=1 // pred_fallthru
      _
    // Predicated region
    $region6: #{kto_loss.1} parent=1 // pred_check
      _
    $region7: #{kto_loss.1} parent=1 // pred_check_branch
      %13 = sbr.rel (0) target = $region9
    $region8: #{kto_loss.1} parent=1 // pred_region
      _
    $region9: #{kto_loss.1} parent=1 // pred_fallthru
      _
    %v14 = vld [vmem:[%s0] sm:$0xff]
    %v15 = vld [vmem:[%s1] sm:$0xff]
    %v16 = vsub.f32 %v14, %v15
    %v17 = vlaneseq
    %v18 = vshrl.u32 %v17, 7
    %v19 = vlaneseq
    %v20 = vand.u32 %v19, 127
    %vm21 = vcmp.eq.s32.totalorder %v18, 2
    %v22 = vsel %vm21, %v16, 0.0
    %23 = vadd.xlane.f32.xlu0 %v22
    %v24 = vpop.xlane.xlu0 %23
    %v25 = vrot.slane %v24, 4
    %v26 = vadd.f32 %v24, %v25
    %v27 = vrot.slane %v26, 2
    %v28 = vadd.f32 %v26, %v27
    %v29 = vrot.slane %v28, 1
    %v30 = vadd.f32 %v28, %v29
    %s31 = vtos %v30
    %s32 = smul.f32 %s31, 0.125
    %s33 = smax.f32 %s32, 0.0
    %v34 = vmul.f32 %v16, 0.1
    %35 = vst [vmem:[%s2] sm:$0xff] %v34
    %vm36 = vcmp.eq.s32.totalorder %v18, 1
    %v37 = vsel %vm36, -0.1, 0.1
    %v38 = vstv %s33
    %v39 = vsub.f32 %v16, %v38
    %v40 = vmul.f32 %v37, %v39
    %v41 = vsub.f32 0.0, %v40
    %v42 = vmul.f32 %v41, 1.442695
    %v43 = vpow.pop %v42
    %v44 = vadd.f32 %v43, 1.0
    %v45 = vrcp.pop %v44
    %v46 = vmul.f32 1.0, %v45
    %v47 = vsub.f32 1.0, %v46
    %vm48 = vcmp.eq.s32.totalorder %v18, 0
    %vm49 = vcmp.lt.s32.totalorder %v20, 5
    %vm50 = vmand %vm48, %vm49
    %vm51 = vcmp.lt.s32.totalorder %v20, 3
    %vm52 = vmand %vm36, %vm51
    %v53 = vsel %vm52, 1.0, 0.0
    %v54 = vsel %vm50, 1.0, %v53
    %v55 = vmul.f32 %v54, %v47
    %56 = vadd.xlane.f32.xlu0 %v55
    %v57 = vpop.xlane.xlu0 %56
    %v58 = vrot.slane %v57, 4
    %v59 = vadd.f32 %v57, %v58
    %v60 = vrot.slane %v59, 2
    %v61 = vadd.f32 %v59, %v60
    %v62 = vrot.slane %v61, 1
    %v63 = vadd.f32 %v61, %v62
    %s64 = vtos %v63
    %s65 = smul.f32 %s64, 0.125
    %s66 = scalar_lea.smem [#allocation2], 0
    %67 = sst [smem:[%s66]] %s65
    %s68 = scalar_lea.smem [#allocation2], 1
    %69 = sst [smem:[%s68]] %s33
    // Predicated region
    $region10: #{kto_loss.1} parent=1 // pred_check
      _
    $region11: #{kto_loss.1} parent=1 // pred_check_branch
      %71 = sbr.rel (0) target = $region13
    $region12: #{kto_loss.1} parent=1 // pred_region
      _
    $region13: #{kto_loss.1} parent=1 // pred_fallthru
      _
    // Predicated region
    $region14: #{kto_loss.1} parent=1 // pred_check
      _
    $region15: #{kto_loss.1} parent=1 // pred_check_branch
      %73 = sbr.rel (0) target = $region17
    $region16: #{kto_loss.1} parent=1 // pred_region
      %s75 = ssub.s32 16, 16
      %76 = vsyncadd [#allocation3], %s75
      %s78 = sshll.u32 %s3, 4
      %s79 = int_to_ptr.vmem [resolvable:$true] %s78
      %81 = dma.smem_to_vmem [#allocation2], 16, %s79, [#allocation3]
    $region17: #{kto_loss.1} parent=1 // pred_fallthru
      _
    // Predicated region
    $region18: #{kto_loss.1} parent=1 // pred_check
      _
    $region19: #{kto_loss.1} parent=1 // pred_check_branch
      %83 = sbr.rel (0) target = $region21
    $region20: #{kto_loss.1} parent=1 // pred_region
      _
    $region21: #{kto_loss.1} parent=1 // pred_fallthru
      _
    // Predicated region
    $region22: #{kto_loss.1} parent=1 // pred_check
      _
    $region23: #{kto_loss.1} parent=1 // pred_check_branch
      %85 = sbr.rel (0) target = $region25
    $region24: #{kto_loss.1} parent=1 // pred_region
      %86 = dma.done [#allocation3], 16
    $region25: #{kto_loss.1} parent=1 // pred_fallthru
      _
    %87 = sfence
    %88 = vsyncpa [#allocation3], 1

</llo_original>
